<compile_context>
chip_gen: v7x
topology: tpu7x:2x2x1
jax: 0.10.0
libtpu: 0.0.40
codegen_flags: <defaults>
</compile_context>

<pallas_src>
import functools
import math

import jax
import jax.numpy as jnp
from jax import lax
from jax.experimental import pallas as pl
from jax.experimental.pallas import tpu as pltpu

_INV_SQRT2 = 1.0 / math.sqrt(2.0)
_TANH_C = math.sqrt(2.0 / math.pi)


def _gelu(h, approx):
    if approx:
        # tanh runs on the EUP slot -> relieves the VPU on v6e/v7x
        # (~1e-3 deviation from torch.nn.GELU()'s exact erf).
        return 0.5 * h * (1.0 + jnp.tanh(_TANH_C * (h + 0.044715 * h * h * h)))
    # Exact (erf-based) GELU in f32, matching torch.nn.GELU() default.
    return 0.5 * h * (1.0 + lax.erf(h * _INV_SQRT2))


def _mlp_resident_kernel(x_ref, w1_ref, b1_ref, w2_ref, b2_ref, o_ref, *,
                         compute_dtype, approx_gelu):
    """Whole MLP for one row tile; w1/w2/b1/b2 are VMEM-resident (constant blocks)."""
    x = x_ref[...].astype(compute_dtype)           # cast on the VPU, not in the wrapper
    h = jnp.dot(x, w1_ref[...], preferred_element_type=jnp.float32)
    h = _gelu(h + b1_ref[...], approx_gelu)        # drop1 is identity (drop=0.0)
    y = jnp.dot(h.astype(w2_ref.dtype), w2_ref[...],
                preferred_element_type=jnp.float32)
    o_ref[...] = (y + b2_ref[...]).astype(o_ref.dtype)   # drop2 is identity


def _mlp_htiled_kernel(x_ref, w1_ref, b1_ref, w2_ref, b2_ref, o_ref, *scratch,
                       compute_dtype, approx_gelu):
    """Fallback: hidden-dim reduction grid axis; partial fc2 sums accumulate in an
    f32 VMEM scratch, or directly into o_ref when the output dtype is already f32."""
    acc_ref = scratch[0] if scratch else o_ref
    k = pl.program_id(1)

    @pl.when(k == 0)
    def _init():
        acc_ref[...] = jnp.zeros_like(acc_ref)

    x = x_ref[...].astype(compute_dtype)
    h = jnp.dot(x, w1_ref[...], preferred_element_type=jnp.float32)
    h = _gelu(h + b1_ref[...], approx_gelu)
    acc_ref[...] += jnp.dot(h.astype(w2_ref.dtype), w2_ref[...],
                            preferred_element_type=jnp.float32)

    @pl.when(k == pl.num_programs(1) - 1)
    def _finish():
        o_ref[...] = (acc_ref[...] + b2_ref[...]).astype(o_ref.dtype)


def _round_up(x, m):
    return (x + m - 1) // m * m


def _pad2d(a, rows, cols):
    pr, pc = rows - a.shape[0], cols - a.shape[1]
    if pr or pc:
        a = jnp.pad(a, ((0, pr), (0, pc)))
    return a


@functools.lru_cache(maxsize=1)
def _vmem_budget_bytes():
    """~75% of per-core VMEM: ~96 MiB on v5e/v6e (128 MiB), ~48 MiB on v7x (64 MiB)."""
    cap = 64 * 1024 * 1024
    try:
        cap = int(getattr(pltpu.get_tpu_info(), "vmem_capacity_bytes", cap)) or cap
    except Exception:
        pass
    return cap * 3 // 4


def _plan(M, C, H, O, x_bytes, out_bytes, cbytes, tm_req, budget, force_hidden_tiling):
    """Pick (resident?, tm, th, Cp, Hp, Op, vmem_estimate) for the current chip."""
    Cp = _round_up(C, 128)
    Op = _round_up(O, 128)
    tm_max = min(max(tm_req, 8), _round_up(M, 8))
    tms = sorted({t for t in (tm_max, 512, 256, 128, 64, 32, 16, 8) if t <= tm_max},
                 reverse=True) or [8]
    cap = budget * 9 // 10          # headroom for Mosaic internal scratch

    # Preferred: weights VMEM-resident, single row-parallel grid axis.
    # (Footprint conservatively assumes double-buffered weight allocation;
    #  pipeline_mode=pl.Buffered(1) on the constant-index weight specs would halve
    #  it further, omitted here for lowering safety.)
    if not force_hidden_tiling:
        Hp = _round_up(H, 128)
        w_bytes = 2 * (Cp * Hp + Hp * Op) * cbytes + 2 * (Hp + Op) * 4
        for tm in tms:
            est = (w_bytes + 2 * tm * Cp * x_bytes + 2 * tm * Op * out_bytes
                   + tm * Hp * 4)                     # f32 fc1 activation live range
            if est <= cap:
                return True, tm, Hp, Cp, Hp, Op, est

    # Fallback: tile the hidden (reduction) dim and stream weight chunks.
    ths = sorted({min(t, _round_up(H, 128)) for t in (512, 256, 128)}, reverse=True)
    for tm in tms:
        for th in ths:
            Hp = _round_up(H, th)
            est = (2 * (Cp * th + th * Op) * cbytes + 2 * (th + Op) * 4
                   + 2 * tm * Cp * x_bytes + 2 * tm * Op * out_bytes
                   + tm * Op * 4 + tm * th * 4)
            if est <= cap:
                return False, tm, th, Cp, Hp, Op, est
    th = ths[-1]
    return False, 8, th, Cp, _round_up(H, th), Op, cap


@functools.partial(jax.jit,
                   static_argnames=("tm", "use_bf16", "approx_gelu", "force_hidden_tiling"))
def linear_mlp(x, w1, b1, w2, b2, *, tm=512, use_bf16=True, approx_gelu=False,
               force_hidden_tiling=False):
    """x: (B, N, C); w1: (C, H); b1: (H,); w2: (H, O); b2: (O,)  ->  (B, N, O)."""
    B, N, C = x.shape
    H = w1.shape[1]
    O = w2.shape[1]
    M = B * N
    out_dtype = x.dtype
    compute_dtype = jnp.bfloat16 if use_bf16 else x.dtype

    x_bytes = jnp.dtype(x.dtype).itemsize
    out_bytes = jnp.dtype(out_dtype).itemsize
    cbytes = jnp.dtype(compute_dtype).itemsize
    budget = _vmem_budget_bytes()

    resident, tm, th, Cp, Hp, Op, vmem_est = _plan(
        M, C, H, O, x_bytes, out_bytes, cbytes, tm, budget, force_hidden_tiling)
    Mp = _round_up(M, tm)

    # x keeps its input dtype (the bf16 cast happens inside the kernel, on the VPU).
    x2 = _pad2d(x.reshape(M, C), Mp, Cp)
    w1p = _pad2d(w1, Cp, Hp).astype(compute_dtype)
    w2p = _pad2d(w2, Hp, Op).astype(compute_dtype)
    b1p = _pad2d(b1.reshape(1, H).astype(jnp.float32), 1, Hp)
    b2p = _pad2d(b2.reshape(1, O).astype(jnp.float32), 1, Op)

    vmem_limit = int(min(budget, max(2 * vmem_est, 16 * 1024 * 1024)))
    w_stream = 1 if resident else Mp // tm            # weight re-stream factor
    cost = pl.CostEstimate(
        flops=2 * Mp * (Cp * Hp + Hp * Op),
        transcendentals=Mp * Hp,                       # erf / tanh in the GELU
        bytes_accessed=int(x2.size * x_bytes
                           + w_stream * (w1p.size + w2p.size) * cbytes
                           + w_stream * (b1p.size + b2p.size) * 4
                           + Mp * Op * out_bytes),
    )

    if resident:
        kernel = functools.partial(_mlp_resident_kernel,
                                   compute_dtype=compute_dtype, approx_gelu=approx_gelu)
        grid_spec = pltpu.PrefetchScalarGridSpec(
            num_scalar_prefetch=0,
            grid=(Mp // tm,),
            in_specs=[
                pl.BlockSpec((tm, Cp), lambda i: (i, 0)),   # x row tile (streamed)
                pl.BlockSpec((Cp, Hp), lambda i: (0, 0)),   # fc1 weight (resident, 1 DMA)
                pl.BlockSpec((1, Hp), lambda i: (0, 0)),    # fc1 bias   (resident)
                pl.BlockSpec((Hp, Op), lambda i: (0, 0)),   # fc2 weight (resident, 1 DMA)
                pl.BlockSpec((1, Op), lambda i: (0, 0)),    # fc2 bias   (resident)
            ],
            out_specs=pl.BlockSpec((tm, Op), lambda i: (i, 0)),
        )
        dim_sem = ("parallel",)
    else:
        # When the output is f32 we accumulate straight into the (k-resident) output
        # block and skip the scratch accumulator; otherwise keep an f32 scratch.
        scratch = [] if out_dtype == jnp.float32 else [pltpu.VMEM((tm, Op), jnp.float32)]
        kernel = functools.partial(_mlp_htiled_kernel,
                                   compute_dtype=compute_dtype, approx_gelu=approx_gelu)
        grid_spec = pltpu.PrefetchScalarGridSpec(
            num_scalar_prefetch=0,
            grid=(Mp // tm, Hp // th),
            in_specs=[
                pl.BlockSpec((tm, Cp), lambda i, k: (i, 0)),   # x row tile
                pl.BlockSpec((Cp, th), lambda i, k: (0, k)),   # fc1 weight chunk
                pl.BlockSpec((1, th), lambda i, k: (0, k)),    # fc1 bias chunk
                pl.BlockSpec((th, Op), lambda i, k: (k, 0)),   # fc2 weight chunk
                pl.BlockSpec((1, Op), lambda i, k: (0, 0)),    # fc2 bias
            ],
            out_specs=pl.BlockSpec((tm, Op), lambda i, k: (i, 0)),
            scratch_shapes=scratch,
        )
        dim_sem = ("parallel", "arbitrary")

    out2 = pl.pallas_call(
        kernel,
        out_shape=jax.ShapeDtypeStruct((Mp, Op), out_dtype),
        grid_spec=grid_spec,
        compiler_params=pltpu.CompilerParams(
            dimension_semantics=dim_sem, vmem_limit_bytes=vmem_limit),
        cost_estimate=cost,
    )(x2, w1p, b1p, w2p, b2p)

    return out2[:M, :O].reshape(B, N, O)


def _reference(x, w1, b1, w2, b2, *, use_bf16, approx_gelu=False):
    """Pure-JAX reference with the same MXU-input precision as the kernel."""
    cdt = jnp.bfloat16 if use_bf16 else x.dtype
    h = jnp.dot(x.astype(cdt), w1.astype(cdt), preferred_element_type=jnp.float32) + b1
    h = _gelu(h, approx_gelu)
    y = jnp.dot(h.astype(cdt), w2.astype(cdt), preferred_element_type=jnp.float32) + b2
    return y.astype(x.dtype)


if __name__ == "__main__":
    # Small shapes consistent with the module: batch=2, seq=8, in=32, hidden=64, out=32.
    B, N, C, H = 2, 8, 32, 64
    O = C

    key = jax.random.PRNGKey(0)
    kx, kw1, kb1, kw2, kb2 = jax.random.split(key, 5)

    x = jax.random.normal(kx, (B, N, C), dtype=jnp.float32)

    # Deterministic parameter init (PyTorch-like uniform bounds), stored transposed.
    bound1 = 1.0 / math.sqrt(C)
    w1 = jax.random.uniform(kw1, (C, H), minval=-bound1, maxval=bound1, dtype=jnp.float32)
    b1 = jax.random.uniform(kb1, (H,), minval=-bound1, maxval=bound1, dtype=jnp.float32)
    bound2 = 1.0 / math.sqrt(H)
    w2 = jax.random.uniform(kw2, (H, O), minval=-bound2, maxval=bound2, dtype=jnp.float32)
    b2 = jax.random.uniform(kb2, (O,), minval=-bound2, maxval=bound2, dtype=jnp.float32)

    # 1) Exact f32 path (weights VMEM-resident): matches the erf-GELU reference tightly.
    out_f32 = jax.block_until_ready(linear_mlp(x, w1, b1, w2, b2, use_bf16=False))
    ref_f32 = _reference(x, w1, b1, w2, b2, use_bf16=False)
    assert out_f32.shape == (B, N, O)
    assert jnp.allclose(out_f32, ref_f32, atol=1e-5, rtol=1e-5), "f32 mismatch vs reference"

    # 2) Default bf16-MXU path (f32 accumulation) vs a matching-precision reference.
    out_bf16 = jax.block_until_ready(linear_mlp(x, w1, b1, w2, b2, use_bf16=True))
    ref_bf16 = _reference(x, w1, b1, w2, b2, use_bf16=True)
    assert out_bf16.shape == (B, N, O)
    assert jnp.allclose(out_bf16, ref_bf16, atol=1e-2, rtol=1e-2), "bf16 mismatch vs reference"

    # 3) Hidden-reduction fallback path, f32 output accumulated directly in o_ref.
    out_ht = jax.block_until_ready(
        linear_mlp(x, w1, b1, w2, b2, use_bf16=False, force_hidden_tiling=True))
    assert jnp.allclose(out_ht, ref_f32, atol=1e-5, rtol=1e-5), "h-tiled f32 mismatch"

    # 4) Hidden-reduction fallback path with bf16 output (uses the f32 scratch acc).
    xb = x.astype(jnp.bfloat16)
    out_hb = jax.block_until_ready(
        linear_mlp(xb, w1, b1, w2, b2, use_bf16=True, force_hidden_tiling=True))
    ref_hb = _reference(xb, w1, b1, w2, b2, use_bf16=True)
    assert jnp.allclose(out_hb.astype(jnp.float32), ref_hb.astype(jnp.float32),
                        atol=3e-2, rtol=3e-2), "h-tiled bf16 mismatch"

    print("KERNEL_OK")
</pallas_src>

<mosaic_0001>
module attributes {stable_mosaic.version = 11 : i64} {
  func.func @_mlp_resident_kernel(%arg0: i32, %arg1: memref<16x128xf32, #tpu.memory_space<vmem>>, %arg2: memref<128x128xf32, #tpu.memory_space<vmem>>, %arg3: memref<1x128xf32, #tpu.memory_space<vmem>>, %arg4: memref<128x128xf32, #tpu.memory_space<vmem>>, %arg5: memref<1x128xf32, #tpu.memory_space<vmem>>, %arg6: memref<16x128xf32, #tpu.memory_space<vmem>>) attributes {dimension_semantics = [#tpu.dimension_semantics<parallel>], iteration_bounds = array<i64: 1>, scalar_prefetch = 0 : i64, scratch_operands = 0 : i64, tpu.core_type = #tpu.core_type<tc>, window_params = [{transform_indices = @transform_0, window_bounds = array<i64: 16, 128>}, {pipeline_mode = #tpu.pipeline_mode<synchronous>, transform_indices = @transform_1, window_bounds = array<i64: 128, 128>}, {pipeline_mode = #tpu.pipeline_mode<synchronous>, transform_indices = @transform_2, window_bounds = array<i64: 1, 128>}, {pipeline_mode = #tpu.pipeline_mode<synchronous>, transform_indices = @transform_3, window_bounds = array<i64: 128, 128>}, {pipeline_mode = #tpu.pipeline_mode<synchronous>, transform_indices = @transform_4, window_bounds = array<i64: 1, 128>}, {transform_indices = @transform_5, window_bounds = array<i64: 16, 128>}]} {
    %c0 = arith.constant 0 : index
    %c0_0 = arith.constant 0 : index
    %0 = vector.load %arg1[%c0, %c0_0] : memref<16x128xf32, #tpu.memory_space<vmem>>, vector<16x128xf32>
    %c0_1 = arith.constant 0 : index
    %c0_2 = arith.constant 0 : index
    %1 = vector.load %arg2[%c0_1, %c0_2] : memref<128x128xf32, #tpu.memory_space<vmem>>, vector<128x128xf32>
    %cst = arith.constant dense<0.000000e+00> : vector<16x128xf32>
    %2 = tpu.matmul %0, %1, %cst {dimension_numbers = #tpu.dot_dimension_numbers<[1], [0], [0], [1], [0, 0, 1, 1], [], []>} : vector<16x128xf32>, vector<128x128xf32>, vector<16x128xf32> -> vector<16x128xf32>
    %c0_3 = arith.constant 0 : index
    %c0_4 = arith.constant 0 : index
    %3 = vector.load %arg3[%c0_3, %c0_4] : memref<1x128xf32, #tpu.memory_space<vmem>>, vector<1x128xf32>
    %4 = vector.broadcast %3 : vector<1x128xf32> to vector<16x128xf32>
    %5 = arith.addf %2, %4 : vector<16x128xf32>
    %cst_5 = arith.constant 5.000000e-01 : f32
    %6 = vector.broadcast %cst_5 : f32 to vector<16x128xf32>
    %7 = arith.mulf %6, %5 : vector<16x128xf32>
    %cst_6 = arith.constant 0.707106769 : f32
    %8 = vector.broadcast %cst_6 : f32 to vector<16x128xf32>
    %9 = arith.mulf %5, %8 : vector<16x128xf32>
    %10 = math.erf %9 : vector<16x128xf32>
    %cst_7 = arith.constant 1.000000e+00 : f32
    %11 = vector.broadcast %cst_7 : f32 to vector<16x128xf32>
    %12 = arith.addf %11, %10 : vector<16x128xf32>
    %13 = arith.mulf %7, %12 : vector<16x128xf32>
    %c0_8 = arith.constant 0 : index
    %c0_9 = arith.constant 0 : index
    %14 = vector.load %arg4[%c0_8, %c0_9] : memref<128x128xf32, #tpu.memory_space<vmem>>, vector<128x128xf32>
    %cst_10 = arith.constant dense<0.000000e+00> : vector<16x128xf32>
    %15 = tpu.matmul %13, %14, %cst_10 {dimension_numbers = #tpu.dot_dimension_numbers<[1], [0], [0], [1], [0, 0, 1, 1], [], []>} : vector<16x128xf32>, vector<128x128xf32>, vector<16x128xf32> -> vector<16x128xf32>
    %c0_11 = arith.constant 0 : index
    %c0_12 = arith.constant 0 : index
    %16 = vector.load %arg5[%c0_11, %c0_12] : memref<1x128xf32, #tpu.memory_space<vmem>>, vector<1x128xf32>
    %17 = vector.broadcast %16 : vector<1x128xf32> to vector<16x128xf32>
    %18 = arith.addf %15, %17 : vector<16x128xf32>
    %c0_13 = arith.constant 0 : index
    %c0_14 = arith.constant 0 : index
    %19 = vector.load %arg6[%c0_13, %c0_14] : memref<16x128xf32, #tpu.memory_space<vmem>>, vector<16x128xf32>
    tpu.vector_store %arg6[%c0_13, %c0_14], %18 {strides = array<i32>} : memref<16x128xf32, #tpu.memory_space<vmem>>, vector<16x128xf32>,
    return
  }
  func.func @transform_0(%arg0: i32) -> (i32, i32) {
    %c0_i32 = arith.constant 0 : i32
    %c0_i32_0 = arith.constant 0 : i32
    return %arg0, %c0_i32 : i32, i32
  }
  func.func @transform_1(%arg0: i32) -> (i32, i32) {
    %c0_i32 = arith.constant 0 : i32
    %c0_i32_0 = arith.constant 0 : i32
    %c0_i32_1 = arith.constant 0 : i32
    return %c0_i32, %c0_i32_0 : i32, i32
  }
  func.func @transform_2(%arg0: i32) -> (i32, i32) {
    %c0_i32 = arith.constant 0 : i32
    %c0_i32_0 = arith.constant 0 : i32
    %c0_i32_1 = arith.constant 0 : i32
    return %c0_i32, %c0_i32_0 : i32, i32
  }
  func.func @transform_3(%arg0: i32) -> (i32, i32) {
    %c0_i32 = arith.constant 0 : i32
    %c0_i32_0 = arith.constant 0 : i32
    %c0_i32_1 = arith.constant 0 : i32
    return %c0_i32, %c0_i32_0 : i32, i32
  }
  func.func @transform_4(%arg0: i32) -> (i32, i32) {
    %c0_i32 = arith.constant 0 : i32
    %c0_i32_0 = arith.constant 0 : i32
    %c0_i32_1 = arith.constant 0 : i32
    return %c0_i32, %c0_i32_0 : i32, i32
  }
  func.func @transform_5(%arg0: i32) -> (i32, i32) {
    %c0_i32 = arith.constant 0 : i32
    %c0_i32_0 = arith.constant 0 : i32
    return %arg0, %c0_i32 : i32, i32
  }
}

</mosaic_0001>

<llo_original>
// kernel: linear_mlp.1
$region0: #{linear_mlp.1}
  #allocation0 [shape = 'u32[]', space=smem, size = 0x4, offset = 0x4, fixed_abs, tag = 'smem constant byte address 0x4 - core index']
  #allocation1 [shape = 'u32[144,128]{1,0:T(1,128)}', space=vmem, size = 0x12000, scoped, tag = 'internal scratch']
  %s0 = inlined_call_operand.vmem [shape: f32[16,128], index: 0, kind: input, shape index: {}]
  %s1 = inlined_call_operand.vmem [shape: f32[128,128], index: 1, kind: input, shape index: {}]
  %s2 = inlined_call_operand.vmem [shape: f32[1,128], index: 2, kind: input, shape index: {}]
  %s3 = inlined_call_operand.vmem [shape: f32[128,128], index: 3, kind: input, shape index: {}]
  %s4 = inlined_call_operand.vmem [shape: f32[1,128], index: 4, kind: input, shape index: {}]
  %s5 = inlined_call_operand.vmem [shape: f32[16,128], index: 5, kind: output, shape index: {}]
  %s6 = sld [smem:[#allocation0]]
  $region30: #{linear_mlp.1} parent=0
    _
  %s8 = ssub.s32 1, %s6
  %s9 = scalar_select 0, %s8, %s6
  // Predicated region
  $region2: #{linear_mlp.1} parent=0 // pred_check
    _
  $region3: #{linear_mlp.1} parent=0 // pred_check_branch
    %11 = sbr.rel (0) target = $region5
  $region4: #{linear_mlp.1} parent=0 // pred_region
    _
  $region5: #{linear_mlp.1} parent=0 // pred_fallthru
    _
  // Predicated region
  $region6: #{linear_mlp.1} parent=0 // pred_check
    _
  $region7: #{linear_mlp.1} parent=0 // pred_check_branch
    %13 = sbr.rel (0) target = $region9
  $region8: #{linear_mlp.1} parent=0 // pred_region
    _
  $region9: #{linear_mlp.1} parent=0 // pred_fallthru
    _
  // Predicated region
  $region10: #{linear_mlp.1} parent=0 // pred_check
    _
  $region11: #{linear_mlp.1} parent=0 // pred_check_branch
    %15 = sbr.rel (0) target = $region13
  $region12: #{linear_mlp.1} parent=0 // pred_region
    _
  $region13: #{linear_mlp.1} parent=0 // pred_fallthru
    _
  // Predicated region
  $region14: #{linear_mlp.1} parent=0 // pred_check
    _
  $region15: #{linear_mlp.1} parent=0 // pred_check_branch
    %17 = sbr.rel (0) target = $region17
  $region16: #{linear_mlp.1} parent=0 // pred_region
    _
  $region17: #{linear_mlp.1} parent=0 // pred_fallthru
    _
  // Predicated region
  $region18: #{linear_mlp.1} parent=0 // pred_check
    _
  $region19: #{linear_mlp.1} parent=0 // pred_check_branch
    %19 = sbr.rel (0) target = $region21
  $region20: #{linear_mlp.1} parent=0 // pred_region
    _
  $region21: #{linear_mlp.1} parent=0 // pred_fallthru
    _
  %v20 = vld [vmem:[%s0] sm:$0xff]
  %v21 = vld [vmem:[%s0 + $0x8] sm:$0xff]
  %v22 = vld [vmem:[%s1] sm:$0xff]
  %v23 = vld [vmem:[%s1 + $0x8] sm:$0xff]
  %v24 = vld [vmem:[%s1 + $0x10] sm:$0xff]
  %v25 = vld [vmem:[%s1 + $0x18] sm:$0xff]
  %v26 = vld [vmem:[%s1 + $0x20] sm:$0xff]
  %v27 = vld [vmem:[%s1 + $0x28] sm:$0xff]
  %v28 = vld [vmem:[%s1 + $0x30] sm:$0xff]
  %v29 = vld [vmem:[%s1 + $0x38] sm:$0xff]
  %v30 = vld [vmem:[%s1 + $0x40] sm:$0xff]
  %v31 = vld [vmem:[%s1 + $0x48] sm:$0xff]
  %v32 = vld [vmem:[%s1 + $0x50] sm:$0xff]
  %v33 = vld [vmem:[%s1 + $0x58] sm:$0xff]
  %v34 = vld [vmem:[%s1 + $0x60] sm:$0xff]
  %v35 = vld [vmem:[%s1 + $0x68] sm:$0xff]
  %v36 = vld [vmem:[%s1 + $0x70] sm:$0xff]
  %v37 = vld [vmem:[%s1 + $0x78] sm:$0xff]
  %v38 = vld [vmem:[%s2] sm:$0x1]
  %v40 = vlaneseq
  %v41 = vshrl.u32 %v40, 7
  %v42 = vsub.s32 0, %v41
  %v43 = vrot.slane %v38, %v42
  %45 = vmatprep.subr.mxu0 0.0
  %46 = vmatpush1.msra.mxu0 %v22
  %47 = vmatprep.subr.mxu0 0.0
  %48 = vmatpush1.msra.mxu0 %v23
  %49 = vmatprep.subr.mxu0 0.0
  %50 = vmatpush1.msra.mxu0 %v24
  %51 = vmatprep.subr.mxu0 0.0
  %52 = vmatpush1.msra.mxu0 %v25
  %53 = vmatprep.subr.mxu0 0.0
  %54 = vmatpush1.msra.mxu0 %v26
  %55 = vmatprep.subr.mxu0 0.0
  %56 = vmatpush1.msra.mxu0 %v27
  %57 = vmatprep.subr.mxu0 0.0
  %58 = vmatpush1.msra.mxu0 %v28
  %59 = vmatprep.subr.mxu0 0.0
  %60 = vmatpush1.msra.mxu0 %v29
  %61 = vmatprep.subr.mxu0 0.0
  %62 = vmatpush1.msra.mxu0 %v30
  %63 = vmatprep.subr.mxu0 0.0
  %64 = vmatpush1.msra.mxu0 %v31
  %65 = vmatprep.subr.mxu0 0.0
  %66 = vmatpush1.msra.mxu0 %v32
  %67 = vmatprep.subr.mxu0 0.0
  %68 = vmatpush1.msra.mxu0 %v33
  %69 = vmatprep.subr.mxu0 0.0
  %70 = vmatpush1.msra.mxu0 %v34
  %71 = vmatprep.subr.mxu0 0.0
  %72 = vmatpush1.msra.mxu0 %v35
  %73 = vmatprep.subr.mxu0 0.0
  %74 = vmatpush1.msra.mxu0 %v36
  %75 = vmatprep.subr.mxu0 0.0
  %76 = vmatpush1.msra.mxu0 %v37
  %77 = vmatprep.subr.mxu0 0.0
  %78 = vmatpush1.msra.mxu0 0.0
  %79 = vmatprep.subr.mxu0 0.0
  %80 = vmatpush1.msra.mxu0 0.0
  %81 = vmatprep.subr.mxu0 0.0
  %82 = vmatpush1.msra.mxu0 0.0
  %83 = vmatprep.subr.mxu0 0.0
  %84 = vmatpush1.msra.mxu0 0.0
  %85 = vmatprep.subr.mxu0 0.0
  %86 = vmatpush1.msra.mxu0 0.0
  %87 = vmatprep.subr.mxu0 0.0
  %88 = vmatpush1.msra.mxu0 0.0
  %89 = vmatprep.subr.mxu0 0.0
  %90 = vmatpush1.msra.mxu0 0.0
  %91 = vmatprep.subr.mxu0 0.0
  %92 = vmatpush1.msra.mxu0 0.0
  %93 = vmatprep.subr.mxu0 0.0
  %94 = vmatpush1.msra.mxu0 0.0
  %95 = vmatprep.subr.mxu0 0.0
  %96 = vmatpush1.msra.mxu0 0.0
  %97 = vmatprep.subr.mxu0 0.0
  %98 = vmatpush1.msra.mxu0 0.0
  %99 = vmatprep.subr.mxu0 0.0
  %100 = vmatpush1.msra.mxu0 0.0
  %101 = vmatprep.subr.mxu0 0.0
  %102 = vmatpush1.msra.mxu0 0.0
  %103 = vmatprep.subr.mxu0 0.0
  %104 = vmatpush1.msra.mxu0 0.0
  %105 = vmatprep.subr.mxu0 0.0
  %106 = vmatpush1.msra.mxu0 0.0
  %107 = vmatprep.subr.mxu0 0.0
  %108 = vmatpush1.msra.mxu0 0.0
  %109 = vmatprep.mubr.f32.mxu0 0.0
  %110 = vmatmul.mubr.f32.gmra.mrb[0].mxu0 %v20
  %v111 = vpop.f32.mrb[0].mxu0
  %v112 = vadd.f32 %v43, %v111
  %v113 = vpop.f32.mrb[0].mxu0
  %114 = vmatprep.mubr.f32.mxu0 0.0
  %115 = vmatmul.mubr.f32.gmra.mrb[0].mxu0 %v21
  %v116 = vpop.f32.mrb[0].mxu0
  %v117 = vadd.f32 %v43, %v116
  %v118 = vpop.f32.mrb[0].mxu0
  %119 = vdwg.mxu0
  %v120 = vmul.f32 %v112, 0.5
  %v121 = vmul.f32 %v117, 0.5
  %v122 = vmul.f32 %v112, 0.70710677
  %v123 = vmul.f32 %v117, 0.70710677
  %v124 = verf.f32.pop %v122
  %v125 = verf.f32.pop %v123
  %v126 = vadd.f32 %v124, 1.0
  %v127 = vadd.f32 %v125, 1.0
  %v128 = vmul.f32 %v120, %v126
  %v129 = vmul.f32 %v121, %v127
  %v130 = vld [vmem:[%s3] sm:$0xff]
  %v131 = vld [vmem:[%s3 + $0x8] sm:$0xff]
  %v132 = vld [vmem:[%s3 + $0x10] sm:$0xff]
  %v133 = vld [vmem:[%s3 + $0x18] sm:$0xff]
  %v134 = vld [vmem:[%s3 + $0x20] sm:$0xff]
  %v135 = vld [vmem:[%s3 + $0x28] sm:$0xff]
  %v136 = vld [vmem:[%s3 + $0x30] sm:$0xff]
  %v137 = vld [vmem:[%s3 + $0x38] sm:$0xff]
  %v138 = vld [vmem:[%s3 + $0x40] sm:$0xff]
  %v139 = vld [vmem:[%s3 + $0x48] sm:$0xff]
  %v140 = vld [vmem:[%s3 + $0x50] sm:$0xff]
  %v141 = vld [vmem:[%s3 + $0x58] sm:$0xff]
  %v142 = vld [vmem:[%s3 + $0x60] sm:$0xff]
  %v143 = vld [vmem:[%s3 + $0x68] sm:$0xff]
  %v144 = vld [vmem:[%s3 + $0x70] sm:$0xff]
  %v145 = vld [vmem:[%s3 + $0x78] sm:$0xff]
  %v146 = vld [vmem:[%s4] sm:$0x1]
  %v148 = vlaneseq
  %v149 = vshrl.u32 %v148, 7
  %v150 = vsub.s32 0, %v149
  %v151 = vrot.slane %v146, %v150
  %153 = vmatprep.subr.mxu0 0.0
  %154 = vmatpush1.msra.mxu0 %v130
  %155 = vmatprep.subr.mxu0 0.0
  %156 = vmatpush1.msra.mxu0 %v131
  %157 = vmatprep.subr.mxu0 0.0
  %158 = vmatpush1.msra.mxu0 %v132
  %159 = vmatprep.subr.mxu0 0.0
  %160 = vmatpush1.msra.mxu0 %v133
  %161 = vmatprep.subr.mxu0 0.0
  %162 = vmatpush1.msra.mxu0 %v134
  %163 = vmatprep.subr.mxu0 0.0
  %164 = vmatpush1.msra.mxu0 %v135
  %165 = vmatprep.subr.mxu0 0.0
  %166 = vmatpush1.msra.mxu0 %v136
  %167 = vmatprep.subr.mxu0 0.0
  %168 = vmatpush1.msra.mxu0 %v137
  %169 = vmatprep.subr.mxu0 0.0
  %170 = vmatpush1.msra.mxu0 %v138
  %171 = vmatprep.subr.mxu0 0.0
  %172 = vmatpush1.msra.mxu0 %v139
  %173 = vmatprep.subr.mxu0 0.0
  %174 = vmatpush1.msra.mxu0 %v140
  %175 = vmatprep.subr.mxu0 0.0
  %176 = vmatpush1.msra.mxu0 %v141
  %177 = vmatprep.subr.mxu0 0.0
  %178 = vmatpush1.msra.mxu0 %v142
  %179 = vmatprep.subr.mxu0 0.0
  %180 = vmatpush1.msra.mxu0 %v143
  %181 = vmatprep.subr.mxu0 0.0
  %182 = vmatpush1.msra.mxu0 %v144
  %183 = vmatprep.subr.mxu0 0.0
  %184 = vmatpush1.msra.mxu0 %v145
  %185 = vmatprep.subr.mxu0 0.0
  %186 = vmatpush1.msra.mxu0 0.0
  %187 = vmatprep.subr.mxu0 0.0
  %188 = vmatpush1.msra.mxu0 0.0
  %189 = vmatprep.subr.mxu0 0.0
  %190 = vmatpush1.msra.mxu0 0.0
  %191 = vmatprep.subr.mxu0 0.0
  %192 = vmatpush1.msra.mxu0 0.0
  %193 = vmatprep.subr.mxu0 0.0
  %194 = vmatpush1.msra.mxu0 0.0
  %195 = vmatprep.subr.mxu0 0.0
  %196 = vmatpush1.msra.mxu0 0.0
  %197 = vmatprep.subr.mxu0 0.0
  %198 = vmatpush1.msra.mxu0 0.0
  %199 = vmatprep.subr.mxu0 0.0
  %200 = vmatpush1.msra.mxu0 0.0
  %201 = vmatprep.subr.mxu0 0.0
  %202 = vmatpush1.msra.mxu0 0.0
  %203 = vmatprep.subr.mxu0 0.0
  %204 = vmatpush1.msra.mxu0 0.0
  %205 = vmatprep.subr.mxu0 0.0
  %206 = vmatpush1.msra.mxu0 0.0
  %207 = vmatprep.subr.mxu0 0.0
  %208 = vmatpush1.msra.mxu0 0.0
  %209 = vmatprep.subr.mxu0 0.0
  %210 = vmatpush1.msra.mxu0 0.0
  %211 = vmatprep.subr.mxu0 0.0
  %212 = vmatpush1.msra.mxu0 0.0
  %213 = vmatprep.subr.mxu0 0.0
  %214 = vmatpush1.msra.mxu0 0.0
  %215 = vmatprep.subr.mxu0 0.0
  %216 = vmatpush1.msra.mxu0 0.0
  %217 = vmatprep.mubr.f32.mxu0 0.0
  %218 = vmatmul.mubr.f32.gmra.mrb[0].mxu0 %v128
  %v219 = vpop.f32.mrb[0].mxu0
  %v220 = vadd.f32 %v151, %v219
  %v221 = vpop.f32.mrb[0].mxu0
  %222 = vmatprep.mubr.f32.mxu0 0.0
  %223 = vmatmul.mubr.f32.gmra.mrb[0].mxu0 %v129
  %v224 = vpop.f32.mrb[0].mxu0
  %v225 = vadd.f32 %v151, %v224
  %v226 = vpop.f32.mrb[0].mxu0
  %227 = vdwg.mxu0
  %228 = vst [vmem:[%s5] sm:$0xff] %v220
  %229 = vst [vmem:[%s5 + $0x8] sm:$0xff] %v225
  // Predicated region
  $region22: #{linear_mlp.1} parent=0 // pred_check
    _
  $region23: #{linear_mlp.1} parent=0 // pred_check_branch
    %231 = sbr.rel (0) target = $region25
  $region24: #{linear_mlp.1} parent=0 // pred_region
    _
  $region25: #{linear_mlp.1} parent=0 // pred_fallthru
    _
  // Predicated region
  $region26: #{linear_mlp.1} parent=0 // pred_check
    _
  $region27: #{linear_mlp.1} parent=0 // pred_check_branch
    %233 = sbr.rel (0) target = $region29
  $region28: #{linear_mlp.1} parent=0 // pred_region
    _
  $region29: #{linear_mlp.1} parent=0 // pred_fallthru
    _

</llo_original>
